<compile_context>
chip_gen: v6e
topology: v6e:2x2x1
jax: 0.10.0
libtpu: 0.0.40
codegen_flags: <defaults>
</compile_context>

<pallas_src>
import jax
import jax.numpy as jnp
from jax import lax
from jax.experimental import pallas as pl
from jax.experimental.pallas import tpu as pltpu


def _frozen_bn_kernel(x_ref, scale_ref, bias_ref, o_ref):
    # x_ref: (block_r, block_s) tile; scale/bias: (block_r, 1) f32, lane-broadcast.
    # Compute in f32 (free in this mem-bound kernel), downcast on store.
    x = x_ref[...].astype(jnp.float32)
    o_ref[...] = (x * scale_ref[...] + bias_ref[...]).astype(o_ref.dtype)


def _round_up(a, b):
    return (a + b - 1) // b * b


_LANE = 128
_MAX_TILE_BYTES = 4 * 1024 * 1024     # per data tile; 2x in + 2x out bufs ~= 16 MiB
_VMEM_LIMIT_BYTES = 40 << 20          # legal on v5e/v6e (128 MiB) and v7x (64 MiB)
_MIN_GRID_STEPS = 4                   # keep megacore + pipelining alive on big inputs
_MIN_TILE_BYTES = 512 * 1024          # don't shrink tiles below this to hit MIN_STEPS


def _pick_blocks(rows, spatial, itemsize, sublane):
    """Byte-budget tiling: rows first, then lane-dense spatial fill."""
    rows_aligned = _round_up(rows, sublane)
    spatial_aligned = _round_up(spatial, _LANE)

    # Cap rows so that at least one 128-lane column still fits the byte budget.
    max_rows = max(sublane,
                   (_MAX_TILE_BYTES // (_LANE * itemsize)) // sublane * sublane)
    block_r = min(rows_aligned, max_rows)
    # Fill the remaining budget along the lane (spatial) axis, 128-multiples.
    block_s = max(_LANE,
                  (_MAX_TILE_BYTES // (block_r * itemsize)) // _LANE * _LANE)
    block_s = min(block_s, spatial_aligned)

    # If maximizing the tile collapsed the grid, halve blocks until we have a
    # few steps again (v7x has 2 TCs; each core also wants >=2 steps to
    # double-buffer) -- but never shrink below _MIN_TILE_BYTES (tiny inputs
    # are fine as a single step).
    while (pl.cdiv(rows, block_r) * pl.cdiv(spatial, block_s)) < _MIN_GRID_STEPS:
        if block_r * block_s * itemsize <= _MIN_TILE_BYTES:
            break
        if block_s > _LANE:
            block_s = _round_up(block_s // 2, _LANE)
        elif block_r > sublane:
            block_r = _round_up(block_r // 2, sublane)
        else:
            break
    return block_r, block_s


def frozen_batch_norm(x, weight, bias, running_mean, running_var, *, donate_x=False):
    """FrozenBatchNorm forward. x is NCHW (4-D) or NCDHW (5-D).

    donate_x=True writes the result in place of x (caller must not reuse x).
    NOTE: rsqrt has NO eps, exactly like the module; running_var == 0 -> inf.
    """
    if x.ndim not in (4, 5):
        raise ValueError("Input tensor must be 4-dimensional or 5-dimensional.")

    N, C = x.shape[0], x.shape[1]
    spatial = 1
    for d in x.shape[2:]:
        spatial *= d
    rows = N * C

    # Fold the four per-channel buffers into scale / effective bias, in f32.
    w32 = weight.astype(jnp.float32)
    b32 = bias.astype(jnp.float32)
    m32 = running_mean.astype(jnp.float32)
    v32 = running_var.astype(jnp.float32)
    scale32 = w32 * lax.rsqrt(v32)
    bias32 = b32 - m32 * scale32

    # Per-row (n, c) params: row r = n*C + c -> params[c].
    scale_r = jnp.broadcast_to(scale32[None, :], (N, C)).reshape(rows, 1)
    bias_r = jnp.broadcast_to(bias32[None, :], (N, C)).reshape(rows, 1)

    x2 = x.reshape(rows, spatial)

    itemsize = jnp.dtype(x.dtype).itemsize
    sublane = {4: 8, 2: 16, 1: 32}.get(itemsize, 8)
    block_r, block_s = _pick_blocks(rows, spatial, itemsize, sublane)

    # cdiv grid, spatial innermost.  No padding / slicing: ragged edge blocks
    # get padded reads and masked stores, which is safe for this elementwise op.
    grid = (pl.cdiv(rows, block_r), pl.cdiv(spatial, block_s))

    extra = {}
    if donate_x:
        extra["input_output_aliases"] = {0: 0}   # x2 buffer reused as output

    out = pl.pallas_call(
        _frozen_bn_kernel,
        out_shape=jax.ShapeDtypeStruct((rows, spatial), x.dtype),
        grid=grid,
        in_specs=[
            pl.BlockSpec((block_r, block_s), lambda i, j: (i, j)),
            pl.BlockSpec((block_r, 1), lambda i, j: (i, 0)),   # resident across j
            pl.BlockSpec((block_r, 1), lambda i, j: (i, 0)),   # resident across j
        ],
        out_specs=pl.BlockSpec((block_r, block_s), lambda i, j: (i, j)),
        compiler_params=pltpu.CompilerParams(
            dimension_semantics=("parallel", "parallel"),
            vmem_limit_bytes=_VMEM_LIMIT_BYTES,
        ),
        **extra,
    )(x2, scale_r, bias_r)

    return out.reshape(x.shape)


def _reference(x, weight, bias, running_mean, running_var):
    scale = weight * lax.rsqrt(running_var)
    b_eff = bias - running_mean * scale
    shape = (1, -1) + (1,) * (x.ndim - 2)
    return x * scale.reshape(shape) + b_eff.reshape(shape)


if __name__ == "__main__":
    key = jax.random.PRNGKey(0)
    k0, k1, k2 = jax.random.split(key, 3)

    # ---- 4-D NCHW case (lane-aligned spatial) ----
    N, C, H, W = 2, 4, 16, 16
    x = jax.random.normal(k0, (N, C, H, W), dtype=jnp.float32)
    weight = jnp.ones((C,), dtype=jnp.float32)
    bias = jnp.zeros((C,), dtype=jnp.float32)
    running_mean = jnp.arange(C, dtype=jnp.float32) * 0.1
    running_var = (jnp.ones((C,), dtype=jnp.float32)
                   + jnp.arange(C, dtype=jnp.float32) * 0.05)

    out = jax.block_until_ready(
        frozen_batch_norm(x, weight, bias, running_mean, running_var))
    ref = _reference(x, weight, bias, running_mean, running_var)
    assert jnp.allclose(out, ref, atol=1e-6, rtol=1e-6), "4-D mismatch vs reference"

    # ---- 5-D NCDHW case (ragged spatial -> exercises masked edge stores) ----
    N5, C5, D5, H5, W5 = 2, 4, 3, 5, 7
    x5 = jax.random.normal(k1, (N5, C5, D5, H5, W5), dtype=jnp.float32)
    w5 = jnp.linspace(0.5, 1.5, C5, dtype=jnp.float32)
    b5 = jnp.linspace(-0.2, 0.2, C5, dtype=jnp.float32)
    m5 = jnp.linspace(-0.1, 0.3, C5, dtype=jnp.float32)
    v5 = jnp.linspace(0.8, 1.6, C5, dtype=jnp.float32)

    out5 = jax.block_until_ready(frozen_batch_norm(x5, w5, b5, m5, v5))
    ref5 = _reference(x5, w5, b5, m5, v5)
    assert jnp.allclose(out5, ref5, atol=1e-6, rtol=1e-6), "5-D mismatch vs reference"

    # ---- Ragged rows AND spatial (N*C not a sublane multiple) ----
    Nr, Cr, Hr, Wr = 1, 5, 9, 11
    xr = jax.random.normal(k2, (Nr, Cr, Hr, Wr), dtype=jnp.float32)
    wr = jnp.linspace(0.7, 1.3, Cr, dtype=jnp.float32)
    br = jnp.linspace(-0.3, 0.3, Cr, dtype=jnp.float32)
    mr = jnp.linspace(-0.2, 0.2, Cr, dtype=jnp.float32)
    vr = jnp.linspace(0.9, 1.4, Cr, dtype=jnp.float32)

    outr = jax.block_until_ready(frozen_batch_norm(xr, wr, br, mr, vr))
    refr = _reference(xr, wr, br, mr, vr)
    assert jnp.allclose(outr, refr, atol=1e-6, rtol=1e-6), "ragged mismatch vs reference"

    print("KERNEL_OK")
</pallas_src>

<mosaic_0001>
module attributes {stable_mosaic.version = 11 : i64} {
  func.func @_frozen_bn_kernel(%arg0: i32, %arg1: i32, %arg2: memref<8x256xf32, #tpu.memory_space<vmem>>, %arg3: memref<8x1xf32, #tpu.memory_space<vmem>>, %arg4: memref<8x1xf32, #tpu.memory_space<vmem>>, %arg5: memref<8x256xf32, #tpu.memory_space<vmem>>) attributes {dimension_semantics = [#tpu.dimension_semantics<parallel>, #tpu.dimension_semantics<parallel>], iteration_bounds = array<i64: 1, 1>, scalar_prefetch = 0 : i64, scratch_operands = 0 : i64, tpu.core_type = #tpu.core_type<tc>, window_params = [{transform_indices = @transform_0, window_bounds = array<i64: 8, 256>}, {transform_indices = @transform_1, window_bounds = array<i64: 8, 1>}, {transform_indices = @transform_2, window_bounds = array<i64: 8, 1>}, {transform_indices = @transform_3, window_bounds = array<i64: 8, 256>}]} {
    %c0 = arith.constant 0 : index
    %c0_0 = arith.constant 0 : index
    %0 = vector.load %arg2[%c0, %c0_0] : memref<8x256xf32, #tpu.memory_space<vmem>>, vector<8x256xf32>
    %c0_1 = arith.constant 0 : index
    %c0_2 = arith.constant 0 : index
    %1 = vector.load %arg3[%c0_1, %c0_2] : memref<8x1xf32, #tpu.memory_space<vmem>>, vector<8x1xf32>
    %2 = vector.broadcast %1 : vector<8x1xf32> to vector<8x256xf32>
    %3 = arith.mulf %0, %2 : vector<8x256xf32>
    %c0_3 = arith.constant 0 : index
    %c0_4 = arith.constant 0 : index
    %4 = vector.load %arg4[%c0_3, %c0_4] : memref<8x1xf32, #tpu.memory_space<vmem>>, vector<8x1xf32>
    %5 = vector.broadcast %4 : vector<8x1xf32> to vector<8x256xf32>
    %6 = arith.addf %3, %5 : vector<8x256xf32>
    %c0_5 = arith.constant 0 : index
    %c0_6 = arith.constant 0 : index
    %7 = vector.load %arg5[%c0_5, %c0_6] : memref<8x256xf32, #tpu.memory_space<vmem>>, vector<8x256xf32>
    tpu.vector_store %arg5[%c0_5, %c0_6], %6 {strides = array<i32>} : memref<8x256xf32, #tpu.memory_space<vmem>>, vector<8x256xf32>,
    return
  }
  func.func @transform_0(%arg0: i32, %arg1: i32) -> (i32, i32) {
    %c0_i32 = arith.constant 0 : i32
    return %arg0, %arg1 : i32, i32
  }
  func.func @transform_1(%arg0: i32, %arg1: i32) -> (i32, i32) {
    %c0_i32 = arith.constant 0 : i32
    %c0_i32_0 = arith.constant 0 : i32
    return %arg0, %c0_i32 : i32, i32
  }
  func.func @transform_2(%arg0: i32, %arg1: i32) -> (i32, i32) {
    %c0_i32 = arith.constant 0 : i32
    %c0_i32_0 = arith.constant 0 : i32
    return %arg0, %c0_i32 : i32, i32
  }
  func.func @transform_3(%arg0: i32, %arg1: i32) -> (i32, i32) {
    %c0_i32 = arith.constant 0 : i32
    return %arg0, %arg1 : i32, i32
  }
}

</mosaic_0001>

<llo_original>
// kernel: tpu_custom_call.1
$region0: #{tpu_custom_call.1}
  #allocation0 [shape = 'u32[]', space=smem, size = 0x4, offset = 0x4, fixed_abs, tag = 'smem constant byte address 0x4 - core index']
  #allocation1 [shape = 'u32[144,128]{1,0:T(1,128)}', space=vmem, size = 0x12000, scoped, tag = 'internal scratch']
  %s0 = inlined_call_operand.vmem [shape: f32[8,256], index: 0, kind: input, shape index: {}]
  %s1 = inlined_call_operand.vmem [shape: f32[8,1], index: 1, kind: input, shape index: {}]
  %s2 = inlined_call_operand.vmem [shape: f32[8,1], index: 2, kind: input, shape index: {}]
  %s3 = inlined_call_operand.hbm [shape: f32[8,256], index: 3, kind: output, shape index: {}]
  %s4 = sld [smem:[#allocation0]]
  $region22: #{tpu_custom_call.1} parent=0
    _
  %s6 = ssub.s32 1, %s4
  %s7 = scalar_select 0, %s6, %s4
  $region1: #{tpu_custom_call.1} parent=0
    #allocation2 [shape = 'u8[8192]{0}', space=vmem, size = 0x2000, scoped, tag = 'output window, operand 0, single buffered']
    #allocation3 [shape = 's32[1]{0}', space=sflag, size = 0x4, scoped, tag = 'scoped memory for tpu_custom_call.1']
    %8 = vsyncpa [#allocation3], 0
    // Predicated region
    $region2: #{tpu_custom_call.1} parent=1 // pred_check
      _
    $region3: #{tpu_custom_call.1} parent=1 // pred_check_branch
      %10 = sbr.rel (0) target = $region5
    $region4: #{tpu_custom_call.1} parent=1 // pred_region
      _
    $region5: #{tpu_custom_call.1} parent=1 // pred_fallthru
      _
    // Predicated region
    $region6: #{tpu_custom_call.1} parent=1 // pred_check
      _
    $region7: #{tpu_custom_call.1} parent=1 // pred_check_branch
      %12 = sbr.rel (0) target = $region9
    $region8: #{tpu_custom_call.1} parent=1 // pred_region
      _
    $region9: #{tpu_custom_call.1} parent=1 // pred_fallthru
      _
    // Predicated region
    $region10: #{tpu_custom_call.1} parent=1 // pred_check
      _
    $region11: #{tpu_custom_call.1} parent=1 // pred_check_branch
      %14 = sbr.rel (0) target = $region13
    $region12: #{tpu_custom_call.1} parent=1 // pred_region
      _
    $region13: #{tpu_custom_call.1} parent=1 // pred_fallthru
      _
    %v15 = vld [vmem:[%s0] sm:$0xff]
    %v16 = vld [vmem:[%s0 + $0x8] sm:$0xff]
    %v17 = vld [vmem:[%s1] sm:$0xff]
    %19 = vset.pattern.permute.xlu0 0
    %20 = vperm.xlu0 %19, %v17
    %v21 = vpop.permute.xlu0 %20
    %v23 = vmul.f32 %v15, %v21
    %v24 = vmul.f32 %v16, %v21
    %v25 = vld [vmem:[%s2] sm:$0xff]
    %27 = vset.pattern.permute.xlu0 0
    %28 = vperm.xlu0 %27, %v25
    %v29 = vpop.permute.xlu0 %28
    %v31 = vadd.f32 %v23, %v29
    %v32 = vadd.f32 %v24, %v29
    %33 = vst [vmem:[#allocation2] sm:$0xff] %v31
    %34 = vst [vmem:[#allocation2 + $0x8] sm:$0xff] %v32
    // Predicated region
    $region14: #{tpu_custom_call.1} parent=1 // pred_check
      _
    $region15: #{tpu_custom_call.1} parent=1 // pred_check_branch
      %36 = sbr.rel (0) target = $region17
    $region16: #{tpu_custom_call.1} parent=1 // pred_region
      %s38 = ssub.s32 256, 256
      %39 = vsyncadd [#allocation3], %s38
      %s41 = sshll.u32 [#allocation2], 4
      %s42 = int_to_ptr.vmem [resolvable:$true] %s41
      %44 = dma.vmem_to_hbm [thread:$0]  %s42, 256, %s3, [#allocation3]
    $region17: #{tpu_custom_call.1} parent=1 // pred_fallthru
      _
    // Predicated region
    $region18: #{tpu_custom_call.1} parent=1 // pred_check
      _
    $region19: #{tpu_custom_call.1} parent=1 // pred_check_branch
      %46 = sbr.rel (0) target = $region21
    $region20: #{tpu_custom_call.1} parent=1 // pred_region
      %47 = dma.done [#allocation3], 256
    $region21: #{tpu_custom_call.1} parent=1 // pred_fallthru
      _
    %48 = vsyncpa [#allocation3], 1

</llo_original>
